<compile_context>
chip_gen: v5e
topology: v5e:2x2
jax: 0.10.0
libtpu: 0.0.40
codegen_flags: <defaults>
</compile_context>

<pallas_src>
import jax
import jax.numpy as jnp
from jax.experimental import pallas as pl
from jax.experimental.pallas import tpu as pltpu


def snake_kernel(s_ref, x_ref, o_ref):
    # s_ref : (rb, 2) f32; column 0 = exp(alpha), column 1 = 1/(exp(alpha)+1e-9)
    # x_ref / o_ref: (rb, tb) tiles of the flattened (B*C, T) input / output.
    x = x_ref[...].astype(jnp.float32)
    s = s_ref[...]
    a = s[:, 0:1]      # exp(alpha), per row
    inv = s[:, 1:2]    # 1/(exp(alpha)+1e-9), per row
    t = jnp.sin(x * a)
    o_ref[...] = (x + inv * (t * t)).astype(o_ref.dtype)


def snake(x, alpha, *, row_tile=512, time_tile=1024):
    """x: (B, C, T), alpha: (1, C, 1) -> (B, C, T). Matches PyTorch Snake.forward."""
    B, C, T = x.shape
    assert alpha.shape == (1, C, 1)
    BC = B * C

    # Hoist per-channel exp / reciprocal out of the per-tile loop (B*C scalars).
    a = jnp.exp(alpha.astype(jnp.float32)).reshape(1, C)           # exp(alpha)
    a_rows = jnp.broadcast_to(a, (B, C)).reshape(BC)               # per row (b*C + c)
    inv_rows = 1.0 / (a_rows + 1e-9)

    # Small-input fallback: T < 128 would force masked partial stores and the
    # launch/per-step overhead dominates tiny tensors; let XLA fuse instead.
    if T < 128 or BC * T < 8 * 128:
        xf = x.astype(jnp.float32)
        s = jnp.sin(xf * a_rows.reshape(B, C, 1))
        y = xf + inv_rows.reshape(B, C, 1) * (s * s)
        return y.astype(x.dtype)

    scales = jnp.stack([a_rows, inv_rows], axis=-1)                # (BC, 2) f32
    x2 = x.reshape(BC, T)

    itemsize = jnp.dtype(x.dtype).itemsize
    sub = {4: 8, 2: 16, 1: 32}.get(itemsize, 8)    # sublane quantum per dtype

    # Row tile: multiple of `sub`, or the full dim when BC is small.
    if BC <= sub:
        rb = BC
    else:
        rb = min(row_tile, BC)
        rb = max(sub, (rb // sub) * sub)
        # v7x megacore: prefer >= 2 row blocks so both TensorCores split on
        # rows and keep their scale block resident across the inner time loop
        # (only when it doesn't shrink tiles to something tiny).
        if pl.cdiv(BC, rb) == 1 and BC >= 128:
            rb = sub * pl.cdiv(pl.cdiv(BC, 2), sub)

    # Time tile: full dim, or a multiple of 128.
    tb = T if T <= time_tile else max(128, (time_tile // 128) * 128)

    grid = (pl.cdiv(BC, rb), pl.cdiv(T, tb))

    # VMEM limit from actual tile bytes: double-buffered x + out tiles,
    # double-buffered (lane-padded) scale tiles, plus headroom. Capped for v7x.
    vmem_limit = 2 * rb * tb * itemsize * 2 + 2 * rb * 128 * 4 + (4 << 20)
    vmem_limit = int(min(vmem_limit, 48 << 20))

    out2 = pl.pallas_call(
        snake_kernel,
        out_shape=jax.ShapeDtypeStruct((BC, T), x.dtype),
        grid_spec=pltpu.PrefetchScalarGridSpec(
            num_scalar_prefetch=0,
            grid=grid,
            in_specs=[
                # Packed per-row scales: reused across the inner time loop.
                pl.BlockSpec((rb, 2), lambda i, j: (i, 0)),
                # x: (rb, tb) tile per grid step.
                pl.BlockSpec((rb, tb), lambda i, j: (i, j)),
            ],
            out_specs=pl.BlockSpec((rb, tb), lambda i, j: (i, j)),
        ),
        compiler_params=pltpu.CompilerParams(
            # Pure elementwise -> no reduction axis; both axes parallel
            # (shards across the two TensorCores on v7x; neutral on v5e/v6e).
            dimension_semantics=("parallel", "parallel"),
            vmem_limit_bytes=vmem_limit,
        ),
    )(scales, x2)

    return out2.reshape(B, C, T)


def snake_ref(x, alpha):
    a = jnp.exp(alpha)
    return x + 1.0 / (a + 1e-9) * jnp.sin(x * a) ** 2


if __name__ == "__main__":
    key = jax.random.PRNGKey(0)
    kx, ka = jax.random.split(key)

    # Small shapes consistent with the module (B, C, T); T chosen >= 128 so
    # the Pallas path (not the tiny-input fallback) is exercised.
    B, C, T = 2, 4, 256
    x = jax.random.normal(kx, (B, C, T), dtype=jnp.float32)
    # nn.Parameter(torch.zeros(1, C, 1)) init; use small deterministic values
    # so the activation term is non-trivial.
    alpha = 0.1 * jax.random.normal(ka, (1, C, 1), dtype=jnp.float32)

    out = jax.block_until_ready(snake(x, alpha))
    ref = snake_ref(x, alpha)
    assert out.shape == (B, C, T)
    assert jnp.allclose(out, ref, atol=1e-5, rtol=1e-5), "Pallas path mismatch"

    # Also exercise the small-T fallback path (matches the original test shape).
    x_small = jax.random.normal(kx, (2, 4, 16), dtype=jnp.float32)
    out_small = jax.block_until_ready(snake(x_small, alpha))
    assert jnp.allclose(out_small, snake_ref(x_small, alpha),
                        atol=1e-5, rtol=1e-5), "fallback path mismatch"

    print("KERNEL_OK")
</pallas_src>

<mosaic_0001>
module attributes {stable_mosaic.version = 11 : i64} {
  func.func @snake_kernel(%arg0: i32, %arg1: i32, %arg2: memref<8x2xf32, #tpu.memory_space<vmem>>, %arg3: memref<8x256xf32, #tpu.memory_space<vmem>>, %arg4: memref<8x256xf32, #tpu.memory_space<vmem>>) attributes {dimension_semantics = [#tpu.dimension_semantics<parallel>, #tpu.dimension_semantics<parallel>], iteration_bounds = array<i64: 1, 1>, scalar_prefetch = 0 : i64, scratch_operands = 0 : i64, tpu.core_type = #tpu.core_type<tc>, window_params = [{transform_indices = @transform_0, window_bounds = array<i64: 8, 2>}, {transform_indices = @transform_1, window_bounds = array<i64: 8, 256>}, {transform_indices = @transform_2, window_bounds = array<i64: 8, 256>}]} {
    %c0 = arith.constant 0 : index
    %c0_0 = arith.constant 0 : index
    %0 = vector.load %arg3[%c0, %c0_0] : memref<8x256xf32, #tpu.memory_space<vmem>>, vector<8x256xf32>
    %c0_1 = arith.constant 0 : index
    %c0_2 = arith.constant 0 : index
    %1 = vector.load %arg2[%c0_1, %c0_2] : memref<8x2xf32, #tpu.memory_space<vmem>>, vector<8x2xf32>
    %2 = vector.extract_strided_slice %1 {offsets = [0, 0], sizes = [8, 1], strides = [1, 1]} : vector<8x2xf32> to vector<8x1xf32>
    %3 = vector.extract_strided_slice %1 {offsets = [0, 1], sizes = [8, 1], strides = [1, 1]} : vector<8x2xf32> to vector<8x1xf32>
    %4 = vector.broadcast %2 : vector<8x1xf32> to vector<8x256xf32>
    %5 = arith.mulf %0, %4 : vector<8x256xf32>
    %6 = math.sin %5 : vector<8x256xf32>
    %7 = arith.mulf %6, %6 : vector<8x256xf32>
    %8 = vector.broadcast %3 : vector<8x1xf32> to vector<8x256xf32>
    %9 = arith.mulf %8, %7 : vector<8x256xf32>
    %10 = arith.addf %0, %9 : vector<8x256xf32>
    %c0_3 = arith.constant 0 : index
    %c0_4 = arith.constant 0 : index
    %11 = vector.load %arg4[%c0_3, %c0_4] : memref<8x256xf32, #tpu.memory_space<vmem>>, vector<8x256xf32>
    tpu.vector_store %arg4[%c0_3, %c0_4], %10 {strides = array<i32>} : memref<8x256xf32, #tpu.memory_space<vmem>>, vector<8x256xf32>,
    return
  }
  func.func @transform_0(%arg0: i32, %arg1: i32) -> (i32, i32) {
    %c0_i32 = arith.constant 0 : i32
    %c0_i32_0 = arith.constant 0 : i32
    return %arg0, %c0_i32 : i32, i32
  }
  func.func @transform_1(%arg0: i32, %arg1: i32) -> (i32, i32) {
    %c0_i32 = arith.constant 0 : i32
    return %arg0, %arg1 : i32, i32
  }
  func.func @transform_2(%arg0: i32, %arg1: i32) -> (i32, i32) {
    %c0_i32 = arith.constant 0 : i32
    return %arg0, %arg1 : i32, i32
  }
}

</mosaic_0001>

<llo_original>
// kernel: tpu_custom_call.1
$region0: #{tpu_custom_call.1}
  #allocation0 [shape = 'u32[]', space=smem, size = 0x4, offset = 0x4, fixed_abs, tag = 'smem constant byte address 0x4 - core index']
  #allocation1 [shape = 'u32[72,128]{1,0:T(1,128)}', space=vmem, size = 0x9000, scoped, tag = 'internal scratch']
  %s0 = inlined_call_operand.vmem [shape: f32[8,2], index: 0, kind: input, shape index: {}]
  %s1 = inlined_call_operand.hbm [shape: f32[8,256], index: 1, kind: input, shape index: {}]
  %s2 = inlined_call_operand.hbm [shape: f32[8,256], index: 2, kind: output, shape index: {}]
  %s3 = sld [smem:[#allocation0]]
  $region22: #{tpu_custom_call.1} parent=0
    _
  %s5 = ssub.s32 1, %s3
  %s6 = scalar_select 0, %s5, %s3
  $region1: #{tpu_custom_call.1} parent=0
    #allocation2 [shape = 'u8[8192]{0}', space=vmem, size = 0x2000, scoped, tag = 'input window, operand 1, single buffered']
    #allocation3 [shape = 's32[1]{0}', space=sflag, size = 0x4, scoped, tag = 'scoped memory for tpu_custom_call.1']
    #allocation4 [shape = 's32[1]{0}', space=sflag, size = 0x4, scoped, tag = 'scoped memory for tpu_custom_call.1']
    #allocation5 [shape = 'u8[8192]{0}', space=vmem, size = 0x2000, scoped, tag = 'output window, operand 0, single buffered']
    %7 = vsyncpa [#allocation3], 0
    %8 = vsyncpa [#allocation4], 0
    // Predicated region
    $region2: #{tpu_custom_call.1} parent=1 // pred_check
      _
    $region3: #{tpu_custom_call.1} parent=1 // pred_check_branch
      %10 = sbr.rel (0) target = $region5
    $region4: #{tpu_custom_call.1} parent=1 // pred_region
      _
    $region5: #{tpu_custom_call.1} parent=1 // pred_fallthru
      _
    // Predicated region
    $region6: #{tpu_custom_call.1} parent=1 // pred_check
      _
    $region7: #{tpu_custom_call.1} parent=1 // pred_check_branch
      %12 = sbr.rel (0) target = $region9
    $region8: #{tpu_custom_call.1} parent=1 // pred_region
      %14 = vsyncadd [#allocation3], 0
      %s16 = sshll.u32 %s1, 4
      %s17 = int_to_ptr.hbm [resolvable:$true] %s16
      %s18 = sshll.u32 [#allocation2], 4
      %s19 = int_to_ptr.vmem [resolvable:$true] %s18
      %21 = dma.hbm_to_vmem [thread:$0]  %s17, 256, %s19, [#allocation3]
    $region9: #{tpu_custom_call.1} parent=1 // pred_fallthru
      _
    // Predicated region
    $region10: #{tpu_custom_call.1} parent=1 // pred_check
      _
    $region11: #{tpu_custom_call.1} parent=1 // pred_check_branch
      %23 = sbr.rel (0) target = $region13
    $region12: #{tpu_custom_call.1} parent=1 // pred_region
      %25 = dma.done [#allocation3], 256
    $region13: #{tpu_custom_call.1} parent=1 // pred_fallthru
      _
    %v26 = vld [vmem:[#allocation2] sm:$0xff]
    %v27 = vld [vmem:[#allocation2 + $0x8] sm:$0xff]
    %v28 = vld [vmem:[%s0] sm:$0xff]
    %30 = vset.pattern.permute.xlu0 0
    %31 = vperm.xlu0 %30, %v28
    %v32 = vpop.permute.xlu0 %31
    %v34 = vmul.f32 %v26, %v32
    %v35 = vmul.f32 %v27, %v32
    %v36 = vand.u32 2147483647, %v34
    %vm37 = vcmp.le.f32.partialorder %v36, 0.7853982
    %vm38 = vcmp.lt.s32.totalorder %v34, 0
    %v39 = vand.u32 %v34, 2139095040
    %v40 = vshrl.u32 %v39, 23
    %v41 = vsub.s32 %v40, 127
    %v42 = vand.u32 2147483647, %v34
    %v43 = vand.u32 %v42, 8388607
    %v44 = vor.u32 %v43, 8388608
    %v45 = vsub.s32 0, %v44
    %v46 = vadd.s32 %v41, 1
    %vm47 = vcmp.gt.s32.totalorder %v46, 0
    %v48 = vsel %vm47, %v46, 0
    %v49 = vshrl.u32 %v48, 5
    %v50 = vand.u32 %v48, 31
    %v51 = vsub.s32 32, %v50
    %v52 = vshrl.u32 683565275, %v51
    %v53 = vshll.u32 683565275, %v50
    %v54 = vshrl.u32 2475754826, %v51
    %v55 = vor.u32 %v53, %v54
    %v56 = vshll.u32 2475754826, %v50
    %v57 = vshrl.u32 2131351028, %v51
    %v58 = vor.u32 %v56, %v57
    %v59 = vshll.u32 2131351028, %v50
    %v60 = vshrl.u32 2102212464, %v51
    %v61 = vor.u32 %v59, %v60
    %v62 = vshll.u32 2102212464, %v50
    %v63 = vshrl.u32 920167782, %v51
    %v64 = vor.u32 %v62, %v63
    %v65 = vshll.u32 920167782, %v50
    %v66 = vshrl.u32 1326507024, %v51
    %v67 = vor.u32 %v65, %v66
    %vm68 = vcmp.lt.s32.totalorder %v49, 1
    %vm69 = vcmp.lt.s32.totalorder %v49, 2
    %vm70 = vcmp.lt.s32.totalorder %v49, 3
    %vm71 = vcmp.lt.s32.totalorder %v49, 4
    %v72 = vsel %vm68, %v52, %v55
    %v73 = vsel %vm71, %v61, 2102212464
    %v74 = vsel %vm70, %v58, %v73
    %v75 = vsel %vm69, %v72, %v74
    %v76 = vsel %vm68, %v55, %v58
    %v77 = vsel %vm71, %v64, 920167782
    %v78 = vsel %vm70, %v61, %v77
    %v79 = vsel %vm69, %v76, %v78
    %v80 = vsel %vm68, %v58, %v61
    %v81 = vsel %vm71, %v67, 1326507024
    %v82 = vsel %vm70, %v64, %v81
    %v83 = vsel %vm69, %v80, %v82
    %v84 = vshll.u32 %v44, 8
    %v85 = vand.u32 %v84, 65535
    %v86 = vshrl.u32 %v84, 16
    %v87 = vand.u32 %v83, 65535
    %v88 = vshrl.u32 %v83, 16
    %v89 = vmul.u32 %v85, %v87
    %v90 = vmul.u32 %v85, %v88
    %v91 = vmul.u32 %v86, %v87
    %v92 = vmul.u32 %v86, %v88
    %v93 = vshll.u32 %v90, 16
    %v94 = vshrl.u32 %v90, 16
    %v95 = vshll.u32 %v91, 16
    %v96 = vshrl.u32 %v91, 16
    %vm97 = vc.u32 %v89, %v93
    %v98 = vsel %vm97, 1, 0
    %v99 = vadd.s32 %v89, %v93
    %v100 = vadd.s32 %v92, %v98
    %vm101 = vc.u32 %v99, %v95
    %v102 = vsel %vm101, 1, 0
    %v103 = vadd.s32 %v99, %v95
    %v104 = vadd.s32 %v100, %v102
    %v105 = vadd.s32 %v104, %v94
    %v106 = vadd.s32 %v105, %v96
    %v107 = vand.u32 %v84, 65535
    %v108 = vshrl.u32 %v84, 16
    %v109 = vand.u32 %v79, 65535
    %v110 = vshrl.u32 %v79, 16
    %v111 = vmul.u32 %v107, %v109
    %v112 = vmul.u32 %v107, %v110
    %v113 = vmul.u32 %v108, %v109
    %v114 = vmul.u32 %v108, %v110
    %v115 = vshll.u32 %v112, 16
    %v116 = vshrl.u32 %v112, 16
    %v117 = vshll.u32 %v113, 16
    %v118 = vshrl.u32 %v113, 16
    %vm119 = vc.u32 %v111, %v115
    %v120 = vsel %vm119, 1, 0
    %v121 = vadd.s32 %v111, %v115
    %v122 = vadd.s32 %v114, %v120
    %vm123 = vc.u32 %v121, %v117
    %v124 = vsel %vm123, 1, 0
    %v125 = vadd.s32 %v121, %v117
    %v126 = vadd.s32 %v122, %v124
    %v127 = vadd.s32 %v126, %v116
    %v128 = vadd.s32 %v127, %v118
    %v129 = vmul.u32 %v84, %v75
    %v130 = vadd.s32 %v106, %v125
    %vm131 = vc.u32 %v106, %v125
    %v132 = vadd.s32 %v128, 1
    %v133 = vsel %vm131, %v132, %v128
    %v134 = vadd.s32 %v129, %v133
    %v135 = vadd.s32 %v134, 536870912
    %v136 = vshrl.u32 %v135, 30
    %v137 = vshll.u32 %v136, 30
    %v138 = vsub.s32 %v134, %v137
    %vm139 = vcmp.lt.s32.totalorder %v138, 0
    %v140 = vsub.s32 0, %v138
    %v141 = vsel %vm139, %v140, %v138
    %v142 = vclz %v141
    %v143 = vsub.s32 %v142, 2
    %vm144 = vcmp.gt.s32.totalorder 0, %v143
    %v145 = vsel %vm144, 0, %v143
    %v146 = vsub.s32 32, %v145
    %v147 = vshll.u32 %v138, %v145
    %v148 = vshrl.u32 %v130, %v146
    %v149 = vor.u32 %v147, %v148
    %v150 = vsub.s32 4294967266, %v145
    %v151 = vadd.s32 %v150, 127
    %v152 = vshll.u32 %v151, 23
    %v153 = vor.u32 4788187, %v152
    %v154 = vand.u32 2147483647, %v153
    %v156 = vcvt.s32.f32 %v149
    %v157 = vmul.f32 %v156, %v154
    %v158 = vxor.u32 %v157, 2147483648
    %v159 = vsel %vm38, %v158, %v157
    %v160 = vsub.s32 4, %v136
    %v161 = vsel %vm38, %v160, %v136
    %v162 = vsel %vm37, %v34, %v159
    %v163 = vsel %vm37, 0, %v161
    %v164 = vmul.f32 %v162, %v162
    %v165 = vmul.f32 %v164, -0.001358992
    %v166 = vadd.f32 %v165, 0.041655596
    %v167 = vmul.f32 %v164, %v166
    %v168 = vadd.f32 %v167, -0.4999988
    %v169 = vmul.f32 %v164, %v168
    %v170 = vadd.f32 1.0, %v169
    %v171 = vmul.f32 %v162, %v162
    %v172 = vmul.f32 %v171, -0.00019511016
    %v173 = vadd.f32 %v172, 0.008332121
    %v174 = vmul.f32 %v171, %v173
    %v175 = vadd.f32 %v174, -0.16666654
    %v176 = vmul.f32 %v171, %v175
    %v177 = vadd.f32 %v176, 1.0
    %v178 = vmul.f32 %v177, %v162
    %vm179 = vweird.f32 %v34
    %v180 = vadd.s32 %v163, 3
    %v181 = vand.u32 %v180, 3
    %vm182 = vcmp.lt.s32.totalorder %v181, 2
    %vm183 = vcmp.eq.s32.totalorder %v181, 0
    %v184 = vxor.u32 %v178, 2147483648
    %v185 = vsel %vm183, %v170, %v184
    %vm186 = vcmp.eq.s32.totalorder %v181, 2
    %v187 = vxor.u32 %v170, 2147483648
    %v188 = vsel %vm186, %v187, %v178
    %v189 = vsel %vm182, %v185, %v188
    %v190 = vsel %vm179, nan, %v189
    %v191 = vand.u32 2147483647, %v35
    %vm192 = vcmp.le.f32.partialorder %v191, 0.7853982
    %vm193 = vcmp.lt.s32.totalorder %v35, 0
    %v194 = vand.u32 %v35, 2139095040
    %v195 = vshrl.u32 %v194, 23
    %v196 = vsub.s32 %v195, 127
    %v197 = vand.u32 2147483647, %v35
    %v198 = vand.u32 %v197, 8388607
    %v199 = vor.u32 %v198, 8388608
    %v200 = vsub.s32 0, %v199
    %v201 = vadd.s32 %v196, 1
    %vm202 = vcmp.gt.s32.totalorder %v201, 0
    %v203 = vsel %vm202, %v201, 0
    %v204 = vshrl.u32 %v203, 5
    %v205 = vand.u32 %v203, 31
    %v206 = vsub.s32 32, %v205
    %v207 = vshrl.u32 683565275, %v206
    %v208 = vshll.u32 683565275, %v205
    %v209 = vshrl.u32 2475754826, %v206
    %v210 = vor.u32 %v208, %v209
    %v211 = vshll.u32 2475754826, %v205
    %v212 = vshrl.u32 2131351028, %v206
    %v213 = vor.u32 %v211, %v212
    %v214 = vshll.u32 2131351028, %v205
    %v215 = vshrl.u32 2102212464, %v206
    %v216 = vor.u32 %v214, %v215
    %v217 = vshll.u32 2102212464, %v205
    %v218 = vshrl.u32 920167782, %v206
    %v219 = vor.u32 %v217, %v218
    %v220 = vshll.u32 920167782, %v205
    %v221 = vshrl.u32 1326507024, %v206
    %v222 = vor.u32 %v220, %v221
    %vm223 = vcmp.lt.s32.totalorder %v204, 1
    %vm224 = vcmp.lt.s32.totalorder %v204, 2
    %vm225 = vcmp.lt.s32.totalorder %v204, 3
    %vm226 = vcmp.lt.s32.totalorder %v204, 4
    %v227 = vsel %vm223, %v207, %v210
    %v228 = vsel %vm226, %v216, 2102212464
    %v229 = vsel %vm225, %v213, %v228
    %v230 = vsel %vm224, %v227, %v229
    %v231 = vsel %vm223, %v210, %v213
    %v232 = vsel %vm226, %v219, 920167782
    %v233 = vsel %vm225, %v216, %v232
    %v234 = vsel %vm224, %v231, %v233
    %v235 = vsel %vm223, %v213, %v216
    %v236 = vsel %vm226, %v222, 1326507024
    %v237 = vsel %vm225, %v219, %v236
    %v238 = vsel %vm224, %v235, %v237
    %v239 = vshll.u32 %v199, 8
    %v240 = vand.u32 %v239, 65535
    %v241 = vshrl.u32 %v239, 16
    %v242 = vand.u32 %v238, 65535
    %v243 = vshrl.u32 %v238, 16
    %v244 = vmul.u32 %v240, %v242
    %v245 = vmul.u32 %v240, %v243
    %v246 = vmul.u32 %v241, %v242
    %v247 = vmul.u32 %v241, %v243
    %v248 = vshll.u32 %v245, 16
    %v249 = vshrl.u32 %v245, 16
    %v250 = vshll.u32 %v246, 16
    %v251 = vshrl.u32 %v246, 16
    %vm252 = vc.u32 %v244, %v248
    %v253 = vsel %vm252, 1, 0
    %v254 = vadd.s32 %v244, %v248
    %v255 = vadd.s32 %v247, %v253
    %vm256 = vc.u32 %v254, %v250
    %v257 = vsel %vm256, 1, 0
    %v258 = vadd.s32 %v254, %v250
    %v259 = vadd.s32 %v255, %v257
    %v260 = vadd.s32 %v259, %v249
    %v261 = vadd.s32 %v260, %v251
    %v262 = vand.u32 %v239, 65535
    %v263 = vshrl.u32 %v239, 16
    %v264 = vand.u32 %v234, 65535
    %v265 = vshrl.u32 %v234, 16
    %v266 = vmul.u32 %v262, %v264
    %v267 = vmul.u32 %v262, %v265
    %v268 = vmul.u32 %v263, %v264
    %v269 = vmul.u32 %v263, %v265
    %v270 = vshll.u32 %v267, 16
    %v271 = vshrl.u32 %v267, 16
    %v272 = vshll.u32 %v268, 16
    %v273 = vshrl.u32 %v268, 16
    %vm274 = vc.u32 %v266, %v270
    %v275 = vsel %vm274, 1, 0
    %v276 = vadd.s32 %v266, %v270
    %v277 = vadd.s32 %v269, %v275
    %vm278 = vc.u32 %v276, %v272
    %v279 = vsel %vm278, 1, 0
    %v280 = vadd.s32 %v276, %v272
    %v281 = vadd.s32 %v277, %v279
    %v282 = vadd.s32 %v281, %v271
    %v283 = vadd.s32 %v282, %v273
    %v284 = vmul.u32 %v239, %v230
    %v285 = vadd.s32 %v261, %v280
    %vm286 = vc.u32 %v261, %v280
    %v287 = vadd.s32 %v283, 1
    %v288 = vsel %vm286, %v287, %v283
    %v289 = vadd.s32 %v284, %v288
    %v290 = vadd.s32 %v289, 536870912
    %v291 = vshrl.u32 %v290, 30
    %v292 = vshll.u32 %v291, 30
    %v293 = vsub.s32 %v289, %v292
    %vm294 = vcmp.lt.s32.totalorder %v293, 0
    %v295 = vsub.s32 0, %v293
    %v296 = vsel %vm294, %v295, %v293
    %v297 = vclz %v296
    %v298 = vsub.s32 %v297, 2
    %vm299 = vcmp.gt.s32.totalorder 0, %v298
    %v300 = vsel %vm299, 0, %v298
    %v301 = vsub.s32 32, %v300
    %v302 = vshll.u32 %v293, %v300
    %v303 = vshrl.u32 %v285, %v301
    %v304 = vor.u32 %v302, %v303
    %v305 = vsub.s32 4294967266, %v300
    %v306 = vadd.s32 %v305, 127
    %v307 = vshll.u32 %v306, 23
    %v308 = vor.u32 4788187, %v307
    %v309 = vand.u32 2147483647, %v308
    %v311 = vcvt.s32.f32 %v304
    %v312 = vmul.f32 %v311, %v309
    %v313 = vxor.u32 %v312, 2147483648
    %v314 = vsel %vm193, %v313, %v312
    %v315 = vsub.s32 4, %v291
    %v316 = vsel %vm193, %v315, %v291
    %v317 = vsel %vm192, %v35, %v314
    %v318 = vsel %vm192, 0, %v316
    %v319 = vmul.f32 %v317, %v317
    %v320 = vmul.f32 %v319, -0.001358992
    %v321 = vadd.f32 %v320, 0.041655596
    %v322 = vmul.f32 %v319, %v321
    %v323 = vadd.f32 %v322, -0.4999988
    %v324 = vmul.f32 %v319, %v323
    %v325 = vadd.f32 1.0, %v324
    %v326 = vmul.f32 %v317, %v317
    %v327 = vmul.f32 %v326, -0.00019511016
    %v328 = vadd.f32 %v327, 0.008332121
    %v329 = vmul.f32 %v326, %v328
    %v330 = vadd.f32 %v329, -0.16666654
    %v331 = vmul.f32 %v326, %v330
    %v332 = vadd.f32 %v331, 1.0
    %v333 = vmul.f32 %v332, %v317
    %vm334 = vweird.f32 %v35
    %v335 = vadd.s32 %v318, 3
    %v336 = vand.u32 %v335, 3
    %vm337 = vcmp.lt.s32.totalorder %v336, 2
    %vm338 = vcmp.eq.s32.totalorder %v336, 0
    %v339 = vxor.u32 %v333, 2147483648
    %v340 = vsel %vm338, %v325, %v339
    %vm341 = vcmp.eq.s32.totalorder %v336, 2
    %v342 = vxor.u32 %v325, 2147483648
    %v343 = vsel %vm341, %v342, %v333
    %v344 = vsel %vm337, %v340, %v343
    %v345 = vsel %vm334, nan, %v344
    %v346 = vmul.f32 %v190, %v190
    %v347 = vmul.f32 %v345, %v345
    %348 = vset.pattern.permute.xlu0 1
    %349 = vperm.xlu0 %348, %v28
    %v350 = vpop.permute.xlu0 %349
    %v352 = vmul.f32 %v350, %v346
    %v353 = vmul.f32 %v350, %v347
    %v354 = vadd.f32 %v26, %v352
    %v355 = vadd.f32 %v27, %v353
    %356 = vst [vmem:[#allocation5] sm:$0xff] %v354
    %357 = vst [vmem:[#allocation5 + $0x8] sm:$0xff] %v355
    // Predicated region
    $region14: #{tpu_custom_call.1} parent=1 // pred_check
      _
    $region15: #{tpu_custom_call.1} parent=1 // pred_check_branch
      %359 = sbr.rel (0) target = $region17
    $region16: #{tpu_custom_call.1} parent=1 // pred_region
      %361 = vsyncadd [#allocation4], 0
      %s363 = sshll.u32 [#allocation5], 4
      %s364 = int_to_ptr.vmem [resolvable:$true] %s363
      %s365 = sshll.u32 %s2, 4
      %s366 = int_to_ptr.hbm [resolvable:$true] %s365
      %368 = dma.vmem_to_hbm [thread:$0]  %s364, 256, %s366, [#allocation4]
    $region17: #{tpu_custom_call.1} parent=1 // pred_fallthru
      _
    // Predicated region
    $region18: #{tpu_custom_call.1} parent=1 // pred_check
      _
    $region19: #{tpu_custom_call.1} parent=1 // pred_check_branch
      %370 = sbr.rel (0) target = $region21
    $region20: #{tpu_custom_call.1} parent=1 // pred_region
      %372 = dma.done [#allocation4], 256
    $region21: #{tpu_custom_call.1} parent=1 // pred_fallthru
      _
    %373 = vsyncpa [#allocation3], 1
    %374 = vsyncpa [#allocation4], 1

</llo_original>
